<compile_context>
chip_gen: v5e
topology: v5e:2x2
jax: 0.10.0
libtpu: 0.0.40
codegen_flags: <defaults>
</compile_context>

<pallas_src>
import math

import jax
import jax.numpy as jnp
from jax.experimental import pallas as pl
from jax.experimental.pallas import tpu as pltpu


def _attention_kernel(q_ref, v_ref, waT_ref, uaT_ref, va_ref, out_ref,
                      m_sc, l_sc, acc_sc):
    # q_ref : (Bb, H)  f32        v_ref : (Bb, Tt, 2H) f32
    # waT   : (2H, A)  bf16       uaT   : (H, A)       bf16
    # va    : (1, A)   f32        out   : (Bb, 2H)     f32
    # m_sc/l_sc : (Bb, 1) f32     acc_sc : (Bb, 2H)    f32
    t_idx = pl.program_id(1)

    @pl.when(t_idx == 0)
    def _():
        m_sc[...] = jnp.full_like(m_sc, -jnp.inf)
        l_sc[...] = jnp.zeros_like(l_sc)
        acc_sc[...] = jnp.zeros_like(acc_sc)

    v = v_ref[...]                                   # (Bb, Tt, 2H) f32
    bb, tt, two_h = v.shape
    a = waT_ref.shape[1]

    # Projections on the MXU: bf16 operands, f32 accumulation.  Cast first so
    # the (free, tile-aligned) reshape moves half the bytes.
    v2d = v.astype(jnp.bfloat16).reshape(bb * tt, two_h)
    proj_v = jnp.dot(v2d, waT_ref[...],
                     preferred_element_type=jnp.float32).reshape(bb, tt, a)
    proj_q = jnp.dot(q_ref[...].astype(jnp.bfloat16), uaT_ref[...],
                     preferred_element_type=jnp.float32)          # (Bb, A)

    e = jnp.tanh(proj_v + proj_q[:, None, :])                     # (Bb, Tt, A) f32

    # Va scoring: VPU multiply + lane reduction (keep the MXU off an N=1 matmul).
    s = jnp.sum(e * va_ref[...], axis=-1)                         # (Bb, Tt) f32

    # Online softmax over the sequence axis (dim=1 of the PyTorch module),
    # normalization deferred to the final step.
    m_prev = m_sc[...]                                            # (Bb, 1)
    m_new = jnp.maximum(m_prev, jnp.max(s, axis=-1, keepdims=True))
    alpha = jnp.exp(m_prev - m_new)                               # (Bb, 1)
    p = jnp.exp(s - m_new)                                        # (Bb, Tt)
    l_sc[...] = alpha * l_sc[...] + jnp.sum(p, axis=-1, keepdims=True)
    acc_sc[...] = alpha * acc_sc[...] + jnp.sum(p[:, :, None] * v, axis=1)
    m_sc[...] = m_new

    @pl.when(t_idx == pl.num_programs(1) - 1)
    def _():
        inv_l = pl.reciprocal(l_sc[...], approx=True)             # EUP slot, ~free
        out_ref[...] = (acc_sc[...] * inv_l).astype(out_ref.dtype)


def _round_up(x, m):
    return ((x + m - 1) // m) * m


def _per_row_bytes(block_t, two_h, h, a):
    # Per-batch-row VMEM footprint of one grid step (generous estimate).
    vals_f32 = 2 * block_t * two_h * 4      # double-buffered f32 values slab
    vals_b16 = 2 * block_t * two_h * 2      # bf16 cast / reshape working copies
    proj = 2 * block_t * a * 4              # proj_v + e f32 temporaries
    small = 6 * block_t * 4 + 4 * (h + 2 * two_h) * 4
    return vals_f32 + vals_b16 + proj + small


def _vmem_budget_bytes():
    try:
        cap = int(pltpu.get_tpu_info().vmem_capacity_bytes)
    except Exception:
        cap = 64 << 20                      # v7x-safe fallback
    return int(cap * 0.70), cap


def attention_pallas(query, values, wa_w, ua_w, va_w, *, block_b=None, block_t=None):
    """query: (B, H) f32, values: (B, T, 2H) f32,
    wa_w: (A, 2H), ua_w: (A, H), va_w: (1, A)  (PyTorch nn.Linear weight layout)."""
    B, H = query.shape
    _, T, TWO_H = values.shape
    A = wa_w.shape[0]

    budget, vmem_cap = _vmem_budget_bytes()
    weights_bytes = (TWO_H * A + H * A) * 2 + A * 4
    budget_rows = max(budget - 2 * weights_bytes, 1 << 20)

    # --- sequence tile -------------------------------------------------------
    if block_t is None:
        if _per_row_bytes(T, TWO_H, H, A) * 8 <= budget_rows or T % 8 != 0:
            block_t = T
        else:
            cands = [d for d in range(8, T, 8) if T % d == 0]
            feas = [d for d in cands
                    if _per_row_bytes(d, TWO_H, H, A) * 8 <= budget_rows]
            if feas:
                block_t = max(feas)
            elif cands:
                block_t = min(cands)
            else:
                block_t = T  # TODO(synk): masked ragged-T tiling for T with no multiple-of-8 divisor.
    assert block_t == T or (T % block_t == 0 and block_t % 8 == 0), \
        "block_t must divide T and be a multiple of 8 (or equal T)"

    # --- batch tile ----------------------------------------------------------
    per_row = _per_row_bytes(block_t, TWO_H, H, A)
    if block_b is None:
        block_b = max(8, (budget_rows // per_row // 8) * 8)
        block_b = min(block_b, 2048)                   # diminishing returns past a few MiB/step
        Bp8 = _round_up(B, 8)
        two_step_cap = max(8, ((Bp8 // 2) // 8) * 8)   # >=2 grid steps when batch allows (v7x TCs)
        block_b = min(block_b, two_step_cap)
    else:
        block_b = max(8, (block_b // 8) * 8)

    Bp = _round_up(B, block_b)
    if Bp != B:
        query = jnp.pad(query, ((0, Bp - B), (0, 0)))
        values = jnp.pad(values, ((0, Bp - B), (0, 0), (0, 0)))

    # Explicit VMEM limit so large tiles compile (scoped default is 16/32 MiB).
    est = block_b * per_row + 2 * weights_bytes + (2 << 20)
    vmem_limit = min(int(vmem_cap * 0.85), max(est, 32 << 20))

    # TODO(synk): optionally stream `values` as bf16 (halves HBM traffic in this
    # memory-bound kernel) at the cost of further deviation from the f32 reference.
    waT = wa_w.T.astype(jnp.bfloat16)        # (2H, A)  bf16 MXU operand
    uaT = ua_w.T.astype(jnp.bfloat16)        # (H, A)   bf16 MXU operand
    va_row = va_w.astype(jnp.float32)        # (1, A)   f32 (used on the VPU)

    out = pl.pallas_call(
        _attention_kernel,
        out_shape=jax.ShapeDtypeStruct((Bp, TWO_H), jnp.float32),
        grid_spec=pltpu.PrefetchScalarGridSpec(
            num_scalar_prefetch=0,
            grid=(Bp // block_b, T // block_t),
            in_specs=[
                pl.BlockSpec((block_b, H), lambda b, t: (b, 0)),
                pl.BlockSpec((block_b, block_t, TWO_H), lambda b, t: (b, t, 0)),
                pl.BlockSpec((TWO_H, A), lambda b, t: (0, 0)),
                pl.BlockSpec((H, A), lambda b, t: (0, 0)),
                pl.BlockSpec((1, A), lambda b, t: (0, 0)),
            ],
            out_specs=pl.BlockSpec((block_b, TWO_H), lambda b, t: (b, 0)),
            scratch_shapes=[
                pltpu.VMEM((block_b, 1), jnp.float32),      # running max
                pltpu.VMEM((block_b, 1), jnp.float32),      # running denom
                pltpu.VMEM((block_b, TWO_H), jnp.float32),  # unnormalized context
            ],
        ),
        compiler_params=pltpu.CompilerParams(
            dimension_semantics=("parallel", "arbitrary"),
            vmem_limit_bytes=int(vmem_limit),
        ),
    )(query, values, waT, uaT, va_row)

    return out[:B]


def _xavier_uniform(key, shape):
    # shape = (fan_out, fan_in), matching nn.Linear.weight
    fan_out, fan_in = shape
    bound = math.sqrt(6.0 / (fan_in + fan_out))
    return jax.random.uniform(key, shape, jnp.float32, -bound, bound)


def attention_reference(query, values, wa_w, ua_w, va_w):
    # Pure-JAX (f32) mirror of the PyTorch forward for validation.
    q = query[:, None, :]                                     # (B, 1, H)
    score = jnp.tanh(values @ wa_w.T + q @ ua_w.T) @ va_w.T   # (B, T, 1)
    w = jax.nn.softmax(score, axis=1)
    return jnp.sum(w * values, axis=1)                        # (B, 2H)


if __name__ == "__main__":
    HIDDEN = 16          # hidden_size
    ATTN = 32            # attention_size
    TWO_H = 2 * HIDDEN

    key = jax.random.PRNGKey(0)
    k_wa, k_ua, k_va, k_q, k_v, k_q2, k_v2 = jax.random.split(key, 7)

    # Deterministic xavier-uniform parameter init (nn.Linear weight shapes).
    wa_w = _xavier_uniform(k_wa, (ATTN, TWO_H))   # Wa.weight : (A, 2H)
    ua_w = _xavier_uniform(k_ua, (ATTN, HIDDEN))  # Ua.weight : (A, H)
    va_w = _xavier_uniform(k_va, (1, ATTN))       # Va.weight : (1, A)

    # Test 1: module demo shapes, auto tiling (single grid step, block_t == T).
    B, T = 2, 8
    query = jax.random.normal(k_q, (B, HIDDEN), jnp.float32)
    values = jax.random.normal(k_v, (B, T, TWO_H), jnp.float32)
    out = jax.block_until_ready(attention_pallas(query, values, wa_w, ua_w, va_w))
    ref = attention_reference(query, values, wa_w, ua_w, va_w)
    assert out.shape == (B, TWO_H)
    # bf16 MXU operands (f32 accumulation) -> bf16-level tolerance.
    assert jnp.allclose(out, ref, atol=5e-2, rtol=5e-2), "mismatch vs reference (test 1)"

    # Test 2: exercise batch padding + the multi-step online-softmax T axis.
    B2, T2 = 20, 16
    query2 = jax.random.normal(k_q2, (B2, HIDDEN), jnp.float32)
    values2 = jax.random.normal(k_v2, (B2, T2, TWO_H), jnp.float32)
    out2 = jax.block_until_ready(
        attention_pallas(query2, values2, wa_w, ua_w, va_w, block_b=8, block_t=8))
    ref2 = attention_reference(query2, values2, wa_w, ua_w, va_w)
    assert out2.shape == (B2, TWO_H)
    assert jnp.allclose(out2, ref2, atol=5e-2, rtol=5e-2), "mismatch vs reference (test 2)"

    print("KERNEL_OK")
</pallas_src>

<mosaic_0001>
module attributes {stable_mosaic.version = 11 : i64} {
  func.func @_attention_kernel(%arg0: i32, %arg1: i32, %arg2: memref<8x16xf32, #tpu.memory_space<vmem>>, %arg3: memref<8x8x32xf32, #tpu.memory_space<vmem>>, %arg4: memref<32x32xbf16, #tpu.memory_space<vmem>>, %arg5: memref<16x32xbf16, #tpu.memory_space<vmem>>, %arg6: memref<1x32xf32, #tpu.memory_space<vmem>>, %arg7: memref<8x32xf32, #tpu.memory_space<vmem>>, %arg8: memref<8x1xf32, #tpu.memory_space<vmem>>, %arg9: memref<8x1xf32, #tpu.memory_space<vmem>>, %arg10: memref<8x32xf32, #tpu.memory_space<vmem>>) attributes {dimension_semantics = [#tpu.dimension_semantics<parallel>, #tpu.dimension_semantics<arbitrary>], iteration_bounds = array<i64: 1, 1>, scalar_prefetch = 0 : i64, scratch_operands = 3 : i64, tpu.core_type = #tpu.core_type<tc>, window_params = [{transform_indices = @transform_0, window_bounds = array<i64: 8, 16>}, {transform_indices = @transform_1, window_bounds = array<i64: 8, 8, 32>}, {pipeline_mode = #tpu.pipeline_mode<synchronous>, transform_indices = @transform_2, window_bounds = array<i64: 32, 32>}, {pipeline_mode = #tpu.pipeline_mode<synchronous>, transform_indices = @transform_3, window_bounds = array<i64: 16, 32>}, {pipeline_mode = #tpu.pipeline_mode<synchronous>, transform_indices = @transform_4, window_bounds = array<i64: 1, 32>}, {transform_indices = @transform_5, window_bounds = array<i64: 8, 32>}]} {
    %c0_i32 = arith.constant 0 : i32
    %0 = arith.cmpi eq, %arg1, %c0_i32 : i32
    %1 = arith.extui %0 : i1 to i32
    %c0_i32_0 = arith.constant 0 : i32
    %2 = arith.cmpi ne, %1, %c0_i32_0 : i32
    scf.if %2 {
      %cst_30 = arith.constant 0xFF800000 : f32
      %50 = vector.broadcast %cst_30 : f32 to vector<8x1xf32>
      %c0_31 = arith.constant 0 : index
      %c0_32 = arith.constant 0 : index
      %51 = vector.load %arg8[%c0_31, %c0_32] : memref<8x1xf32, #tpu.memory_space<vmem>>, vector<8x1xf32>
      tpu.vector_store %arg8[%c0_31, %c0_32], %50 {strides = array<i32>} : memref<8x1xf32, #tpu.memory_space<vmem>>, vector<8x1xf32>,
      %cst_33 = arith.constant 0.000000e+00 : f32
      %52 = vector.broadcast %cst_33 : f32 to vector<8x1xf32>
      %c0_34 = arith.constant 0 : index
      %c0_35 = arith.constant 0 : index
      %53 = vector.load %arg9[%c0_34, %c0_35] : memref<8x1xf32, #tpu.memory_space<vmem>>, vector<8x1xf32>
      tpu.vector_store %arg9[%c0_34, %c0_35], %52 {strides = array<i32>} : memref<8x1xf32, #tpu.memory_space<vmem>>, vector<8x1xf32>,
      %cst_36 = arith.constant 0.000000e+00 : f32
      %54 = vector.broadcast %cst_36 : f32 to vector<8x32xf32>
      %c0_37 = arith.constant 0 : index
      %c0_38 = arith.constant 0 : index
      %55 = vector.load %arg10[%c0_37, %c0_38] : memref<8x32xf32, #tpu.memory_space<vmem>>, vector<8x32xf32>
      tpu.vector_store %arg10[%c0_37, %c0_38], %54 {strides = array<i32>} : memref<8x32xf32, #tpu.memory_space<vmem>>, vector<8x32xf32>,
    } else {
    }
    %c0 = arith.constant 0 : index
    %c0_1 = arith.constant 0 : index
    %c0_2 = arith.constant 0 : index
    %3 = vector.load %arg3[%c0, %c0_1, %c0_2] : memref<8x8x32xf32, #tpu.memory_space<vmem>>, vector<8x8x32xf32>
    %4 = arith.truncf %3 : vector<8x8x32xf32> to vector<8x8x32xbf16>
    %5 = vector.shape_cast %4 : vector<8x8x32xbf16> to vector<64x32xbf16>
    %c0_3 = arith.constant 0 : index
    %c0_4 = arith.constant 0 : index
    %6 = vector.load %arg4[%c0_3, %c0_4] : memref<32x32xbf16, #tpu.memory_space<vmem>>, vector<32x32xbf16>
    %cst = arith.constant dense<0.000000e+00> : vector<64x32xf32>
    %7 = tpu.matmul %5, %6, %cst {dimension_numbers = #tpu.dot_dimension_numbers<[1], [0], [0], [1], [0, 0, 1, 1], [], []>} : vector<64x32xbf16>, vector<32x32xbf16>, vector<64x32xf32> -> vector<64x32xf32>
    %8 = vector.shape_cast %7 : vector<64x32xf32> to vector<8x8x32xf32>
    %c0_5 = arith.constant 0 : index
    %c0_6 = arith.constant 0 : index
    %9 = vector.load %arg2[%c0_5, %c0_6] : memref<8x16xf32, #tpu.memory_space<vmem>>, vector<8x16xf32>
    %10 = arith.truncf %9 : vector<8x16xf32> to vector<8x16xbf16>
    %c0_7 = arith.constant 0 : index
    %c0_8 = arith.constant 0 : index
    %11 = vector.load %arg5[%c0_7, %c0_8] : memref<16x32xbf16, #tpu.memory_space<vmem>>, vector<16x32xbf16>
    %cst_9 = arith.constant dense<0.000000e+00> : vector<8x32xf32>
    %12 = tpu.matmul %10, %11, %cst_9 {dimension_numbers = #tpu.dot_dimension_numbers<[1], [0], [0], [1], [0, 0, 1, 1], [], []>} : vector<8x16xbf16>, vector<16x32xbf16>, vector<8x32xf32> -> vector<8x32xf32>
    %13 = vector.shape_cast %12 : vector<8x32xf32> to vector<8x1x32xf32>
    %14 = vector.broadcast %13 : vector<8x1x32xf32> to vector<8x8x32xf32>
    %15 = arith.addf %8, %14 : vector<8x8x32xf32>
    %16 = math.tanh %15 : vector<8x8x32xf32>
    %c0_10 = arith.constant 0 : index
    %c0_11 = arith.constant 0 : index
    %17 = vector.load %arg6[%c0_10, %c0_11] : memref<1x32xf32, #tpu.memory_space<vmem>>, vector<1x32xf32>
    %18 = vector.shape_cast %17 : vector<1x32xf32> to vector<1x1x32xf32>
    %19 = vector.broadcast %18 : vector<1x1x32xf32> to vector<8x8x32xf32>
    %20 = arith.mulf %16, %19 : vector<8x8x32xf32>
    %cst_12 = arith.constant dense<0.000000e+00> : vector<8x8xf32>
    %21 = vector.multi_reduction <add>, %20, %cst_12 [2] : vector<8x8x32xf32> to vector<8x8xf32>
    %c0_13 = arith.constant 0 : index
    %c0_14 = arith.constant 0 : index
    %22 = vector.load %arg8[%c0_13, %c0_14] : memref<8x1xf32, #tpu.memory_space<vmem>>, vector<8x1xf32>
    %cst_15 = arith.constant dense<0xFF800000> : vector<8xf32>
    %23 = vector.multi_reduction <maximumf>, %21, %cst_15 [1] : vector<8x8xf32> to vector<8xf32>
    %24 = vector.shape_cast %23 : vector<8xf32> to vector<8x1xf32>
    %25 = arith.maximumf %22, %24 : vector<8x1xf32>
    %26 = arith.subf %22, %25 : vector<8x1xf32>
    %27 = math.exp %26 : vector<8x1xf32>
    %28 = vector.broadcast %25 : vector<8x1xf32> to vector<8x8xf32>
    %29 = arith.subf %21, %28 : vector<8x8xf32>
    %30 = math.exp %29 : vector<8x8xf32>
    %c0_16 = arith.constant 0 : index
    %c0_17 = arith.constant 0 : index
    %31 = vector.load %arg9[%c0_16, %c0_17] : memref<8x1xf32, #tpu.memory_space<vmem>>, vector<8x1xf32>
    %32 = arith.mulf %27, %31 : vector<8x1xf32>
    %cst_18 = arith.constant dense<0.000000e+00> : vector<8xf32>
    %33 = vector.multi_reduction <add>, %30, %cst_18 [1] : vector<8x8xf32> to vector<8xf32>
    %34 = vector.shape_cast %33 : vector<8xf32> to vector<8x1xf32>
    %35 = arith.addf %32, %34 : vector<8x1xf32>
    %c0_19 = arith.constant 0 : index
    %c0_20 = arith.constant 0 : index
    %36 = vector.load %arg9[%c0_19, %c0_20] : memref<8x1xf32, #tpu.memory_space<vmem>>, vector<8x1xf32>
    tpu.vector_store %arg9[%c0_19, %c0_20], %35 {strides = array<i32>} : memref<8x1xf32, #tpu.memory_space<vmem>>, vector<8x1xf32>,
    %c0_21 = arith.constant 0 : index
    %c0_22 = arith.constant 0 : index
    %37 = vector.load %arg10[%c0_21, %c0_22] : memref<8x32xf32, #tpu.memory_space<vmem>>, vector<8x32xf32>
    %38 = vector.broadcast %27 : vector<8x1xf32> to vector<8x32xf32>
    %39 = arith.mulf %38, %37 : vector<8x32xf32>
    %40 = vector.shape_cast %30 : vector<8x8xf32> to vector<8x8x1xf32>
    %41 = vector.broadcast %40 : vector<8x8x1xf32> to vector<8x8x32xf32>
    %42 = arith.mulf %41, %3 : vector<8x8x32xf32>
    %cst_23 = arith.constant dense<0.000000e+00> : vector<8x32xf32>
    %43 = vector.multi_reduction <add>, %42, %cst_23 [1] : vector<8x8x32xf32> to vector<8x32xf32>
    %44 = arith.addf %39, %43 : vector<8x32xf32>
    %c0_24 = arith.constant 0 : index
    %c0_25 = arith.constant 0 : index
    %45 = vector.load %arg10[%c0_24, %c0_25] : memref<8x32xf32, #tpu.memory_space<vmem>>, vector<8x32xf32>
    tpu.vector_store %arg10[%c0_24, %c0_25], %44 {strides = array<i32>} : memref<8x32xf32, #tpu.memory_space<vmem>>, vector<8x32xf32>,
    %c0_26 = arith.constant 0 : index
    %c0_27 = arith.constant 0 : index
    %46 = vector.load %arg8[%c0_26, %c0_27] : memref<8x1xf32, #tpu.memory_space<vmem>>, vector<8x1xf32>
    tpu.vector_store %arg8[%c0_26, %c0_27], %25 {strides = array<i32>} : memref<8x1xf32, #tpu.memory_space<vmem>>, vector<8x1xf32>,
    %c0_i32_28 = arith.constant 0 : i32
    %47 = arith.cmpi eq, %arg1, %c0_i32_28 : i32
    %48 = arith.extui %47 : i1 to i32
    %c0_i32_29 = arith.constant 0 : i32
    %49 = arith.cmpi ne, %48, %c0_i32_29 : i32
    scf.if %49 {
      %c0_30 = arith.constant 0 : index
      %c0_31 = arith.constant 0 : index
      %50 = vector.load %arg9[%c0_30, %c0_31] : memref<8x1xf32, #tpu.memory_space<vmem>>, vector<8x1xf32>
      %51 = tpu.reciprocal %50 {approx = true} : vector<8x1xf32> -> vector<8x1xf32>
      %c0_32 = arith.constant 0 : index
      %c0_33 = arith.constant 0 : index
      %52 = vector.load %arg10[%c0_32, %c0_33] : memref<8x32xf32, #tpu.memory_space<vmem>>, vector<8x32xf32>
      %53 = vector.broadcast %51 : vector<8x1xf32> to vector<8x32xf32>
      %54 = arith.mulf %52, %53 : vector<8x32xf32>
      %c0_34 = arith.constant 0 : index
      %c0_35 = arith.constant 0 : index
      %55 = vector.load %arg7[%c0_34, %c0_35] : memref<8x32xf32, #tpu.memory_space<vmem>>, vector<8x32xf32>
      tpu.vector_store %arg7[%c0_34, %c0_35], %54 {strides = array<i32>} : memref<8x32xf32, #tpu.memory_space<vmem>>, vector<8x32xf32>,
    } else {
    }
    return
  }
  func.func @transform_0(%arg0: i32, %arg1: i32) -> (i32, i32) {
    %c0_i32 = arith.constant 0 : i32
    %c0_i32_0 = arith.constant 0 : i32
    return %arg0, %c0_i32 : i32, i32
  }
  func.func @transform_1(%arg0: i32, %arg1: i32) -> (i32, i32, i32) {
    %c0_i32 = arith.constant 0 : i32
    %c0_i32_0 = arith.constant 0 : i32
    return %arg0, %arg1, %c0_i32 : i32, i32, i32
  }
  func.func @transform_2(%arg0: i32, %arg1: i32) -> (i32, i32) {
    %c0_i32 = arith.constant 0 : i32
    %c0_i32_0 = arith.constant 0 : i32
    %c0_i32_1 = arith.constant 0 : i32
    return %c0_i32, %c0_i32_0 : i32, i32
  }
  func.func @transform_3(%arg0: i32, %arg1: i32) -> (i32, i32) {
    %c0_i32 = arith.constant 0 : i32
    %c0_i32_0 = arith.constant 0 : i32
    %c0_i32_1 = arith.constant 0 : i32
    return %c0_i32, %c0_i32_0 : i32, i32
  }
  func.func @transform_4(%arg0: i32, %arg1: i32) -> (i32, i32) {
    %c0_i32 = arith.constant 0 : i32
    %c0_i32_0 = arith.constant 0 : i32
    %c0_i32_1 = arith.constant 0 : i32
    return %c0_i32, %c0_i32_0 : i32, i32
  }
  func.func @transform_5(%arg0: i32, %arg1: i32) -> (i32, i32) {
    %c0_i32 = arith.constant 0 : i32
    %c0_i32_0 = arith.constant 0 : i32
    return %arg0, %c0_i32 : i32, i32
  }
}

</mosaic_0001>

<llo_original>
// kernel: tpu_custom_call.1
$region0: #{tpu_custom_call.1}
  #allocation0 [shape = 'u32[]', space=smem, size = 0x4, offset = 0x4, fixed_abs, tag = 'smem constant byte address 0x4 - core index']
  #allocation1 [shape = 'u32[72,128]{1,0:T(1,128)}', space=vmem, size = 0x9000, scoped, tag = 'internal scratch']
  #allocation2 [shape = 'f32[8,1]{1,0:T(8,128)}', space=vmem, size = 0x1000, scoped, tag = 'scratch operand']
  #allocation3 [shape = 'f32[8,1]{1,0:T(8,128)}', space=vmem, size = 0x1000, scoped, tag = 'scratch operand']
  #allocation4 [shape = 'f32[8,32]{1,0:T(8,128)}', space=vmem, size = 0x1000, scoped, tag = 'scratch operand']
  %s0 = inlined_call_operand.hbm [shape: f32[8,16], index: 0, kind: input, shape index: {}]
  %s1 = inlined_call_operand.hbm [shape: f32[8,8,32], index: 1, kind: input, shape index: {}]
  %s2 = inlined_call_operand.hbm [shape: bf16[32,32], index: 2, kind: input, shape index: {}]
  %s3 = inlined_call_operand.hbm [shape: bf16[16,32], index: 3, kind: input, shape index: {}]
  %s4 = inlined_call_operand.vmem [shape: f32[1,32], index: 4, kind: input, shape index: {}]
  %s5 = inlined_call_operand.hbm [shape: f32[8,32], index: 5, kind: output, shape index: {}]
  %s6 = sld [smem:[#allocation0]]
  $region54: #{tpu_custom_call.1} parent=0
    _
  %s8 = ssub.s32 1, %s6
  %s9 = scalar_select 0, %s8, %s6
  $region1: #{tpu_custom_call.1} parent=0
    #allocation5 [shape = 'u8[4096]{0}', space=vmem, size = 0x1000, scoped, tag = 'input window, operand 0, single buffered']
    #allocation6 [shape = 's32[1]{0}', space=sflag, size = 0x4, scoped, tag = 'scoped memory for tpu_custom_call.1']
    #allocation7 [shape = 's32[1]{0}', space=sflag, size = 0x4, scoped, tag = 'scoped memory for tpu_custom_call.1']
    #allocation8 [shape = 'u8[32768]{0}', space=vmem, size = 0x8000, scoped, tag = 'input window, operand 1, single buffered']
    #allocation9 [shape = 's32[1]{0}', space=sflag, size = 0x4, scoped, tag = 'scoped memory for tpu_custom_call.1']
    #allocation10 [shape = 'u8[8192]{0}', space=vmem, size = 0x2000, scoped, tag = 'input window, operand 2, single buffered']
    #allocation11 [shape = 'u8[4096]{0}', space=vmem, size = 0x1000, scoped, tag = 'input window, operand 3, single buffered']
    #allocation12 [shape = 's32[1]{0}', space=sflag, size = 0x4, scoped, tag = 'scoped memory for tpu_custom_call.1']
    #allocation13 [shape = 'u8[4096]{0}', space=vmem, size = 0x1000, scoped, tag = 'output window, operand 0, single buffered']
    %10 = vsyncpa [#allocation6], 0
    %11 = vsyncpa [#allocation9], 0
    %12 = vsyncpa [#allocation12], 0
    %13 = vsyncpa [#allocation7], 0
    // Predicated region
    $region2: #{tpu_custom_call.1} parent=1 // pred_check
      _
    $region3: #{tpu_custom_call.1} parent=1 // pred_check_branch
      %15 = sbr.rel (0) target = $region5
    $region4: #{tpu_custom_call.1} parent=1 // pred_region
      %17 = vsyncadd [#allocation6], 0
      %s19 = sshll.u32 %s0, 4
      %s20 = int_to_ptr.hbm [resolvable:$true] %s19
      %s21 = sshll.u32 [#allocation5], 4
      %s22 = int_to_ptr.vmem [resolvable:$true] %s21
      %24 = dma.hbm_to_vmem [thread:$0]  %s20, 128, %s22, [#allocation6]
    $region5: #{tpu_custom_call.1} parent=1 // pred_fallthru
      _
    // Predicated region
    $region6: #{tpu_custom_call.1} parent=1 // pred_check
      _
    $region7: #{tpu_custom_call.1} parent=1 // pred_check_branch
      %26 = sbr.rel (0) target = $region9
    $region8: #{tpu_custom_call.1} parent=1 // pred_region
      %28 = vsyncadd [#allocation9], 0
      %s29 = sshll.u32 %s1, 4
      %s30 = int_to_ptr.hbm [resolvable:$true] %s29
      %s31 = sshll.u32 [#allocation8], 4
      %s32 = int_to_ptr.vmem [resolvable:$true] %s31
      %37 = dma.hbm_to_vmem [thread:$0]  %s30, 1024, %s32, [#allocation9], 128, 128, 8
    $region9: #{tpu_custom_call.1} parent=1 // pred_fallthru
      _
    // Predicated region
    $region10: #{tpu_custom_call.1} parent=1 // pred_check
      _
    $region11: #{tpu_custom_call.1} parent=1 // pred_check_branch
      %39 = sbr.rel (0) target = $region13
    $region12: #{tpu_custom_call.1} parent=1 // pred_region
      %41 = vsyncadd [#allocation9], 0
      %s42 = sshll.u32 %s2, 4
      %s43 = int_to_ptr.hbm [resolvable:$true] %s42
      %s44 = sshll.u32 [#allocation10], 4
      %s45 = int_to_ptr.vmem [resolvable:$true] %s44
      %50 = dma.hbm_to_vmem [thread:$0]  %s43, 256, %s45, [#allocation9], 64, 64, 4
    $region13: #{tpu_custom_call.1} parent=1 // pred_fallthru
      _
    // Predicated region
    $region14: #{tpu_custom_call.1} parent=1 // pred_check
      _
    $region15: #{tpu_custom_call.1} parent=1 // pred_check_branch
      %52 = sbr.rel (0) target = $region17
    $region16: #{tpu_custom_call.1} parent=1 // pred_region
      %54 = vsyncadd [#allocation12], 0
      %s55 = sshll.u32 %s3, 4
      %s56 = int_to_ptr.hbm [resolvable:$true] %s55
      %s57 = sshll.u32 [#allocation11], 4
      %s58 = int_to_ptr.vmem [resolvable:$true] %s57
      %63 = dma.hbm_to_vmem [thread:$0]  %s56, 128, %s58, [#allocation12], 64, 64, 4
    $region17: #{tpu_custom_call.1} parent=1 // pred_fallthru
      _
    // Predicated region
    $region18: #{tpu_custom_call.1} parent=1 // pred_check
      _
    $region19: #{tpu_custom_call.1} parent=1 // pred_check_branch
      %65 = sbr.rel (0) target = $region21
    $region20: #{tpu_custom_call.1} parent=1 // pred_region
      _
    $region21: #{tpu_custom_call.1} parent=1 // pred_fallthru
      _
    // Predicated region
    $region22: #{tpu_custom_call.1} parent=1 // pred_check
      _
    $region23: #{tpu_custom_call.1} parent=1 // pred_check_branch
      %67 = sbr.rel (0) target = $region25
    $region24: #{tpu_custom_call.1} parent=1 // pred_region
      %69 = dma.done [#allocation6], 128
    $region25: #{tpu_custom_call.1} parent=1 // pred_fallthru
      _
    // Predicated region
    $region26: #{tpu_custom_call.1} parent=1 // pred_check
      _
    $region27: #{tpu_custom_call.1} parent=1 // pred_check_branch
      %71 = sbr.rel (0) target = $region29
    $region28: #{tpu_custom_call.1} parent=1 // pred_region
      %73 = dma.done [#allocation9], 1024
    $region29: #{tpu_custom_call.1} parent=1 // pred_fallthru
      _
    // Predicated region
    $region30: #{tpu_custom_call.1} parent=1 // pred_check
      _
    $region31: #{tpu_custom_call.1} parent=1 // pred_check_branch
      %75 = sbr.rel (0) target = $region33
    $region32: #{tpu_custom_call.1} parent=1 // pred_region
      %77 = dma.done [#allocation9], 256
    $region33: #{tpu_custom_call.1} parent=1 // pred_fallthru
      _
    // Predicated region
    $region34: #{tpu_custom_call.1} parent=1 // pred_check
      _
    $region35: #{tpu_custom_call.1} parent=1 // pred_check_branch
      %79 = sbr.rel (0) target = $region37
    $region36: #{tpu_custom_call.1} parent=1 // pred_region
      %81 = dma.done [#allocation12], 128
    $region37: #{tpu_custom_call.1} parent=1 // pred_fallthru
      _
    %p83 = scmp.eq.s32.totalorder 0, 0
    // Predicated region
    $region38: #{tpu_custom_call.1} parent=1 // pred_check
      %p84 = pneg %p83
    $region39: #{tpu_custom_call.1} parent=1 // pred_check_branch
      %86 = sbr.rel (%p84) target = $region41
    $region40: #{tpu_custom_call.1} parent=1 // pred_region
      %vm87 = vcmask 7168
      %88 = vst.msk [vmem:[#allocation2] sm:$0xff] %vm87, -inf
      %89 = vst.msk [vmem:[#allocation3] sm:$0xff] %vm87, 0.0
      %vm90 = vcmask 261120
      %91 = vst.msk [vmem:[#allocation4] sm:$0xff] %vm90, 0.0
    $region41: #{tpu_custom_call.1} parent=1 // pred_fallthru
      _
    %v92 = vld [vmem:[#allocation8] sm:$0xff]
    %v93 = vld [vmem:[#allocation8 + $0x8] sm:$0xff]
    %v94 = vld [vmem:[#allocation8 + $0x10] sm:$0xff]
    %v95 = vld [vmem:[#allocation8 + $0x18] sm:$0xff]
    %v96 = vld [vmem:[#allocation8 + $0x20] sm:$0xff]
    %v97 = vld [vmem:[#allocation8 + $0x28] sm:$0xff]
    %v98 = vld [vmem:[#allocation8 + $0x30] sm:$0xff]
    %v99 = vld [vmem:[#allocation8 + $0x38] sm:$0xff]
    %v100 = vpack.c.bf16 %v92, %v92
    %v101 = vpack.c.bf16 %v93, %v93
    %v102 = vpack.c.bf16 %v94, %v94
    %v103 = vpack.c.bf16 %v95, %v95
    %v104 = vpack.c.bf16 %v96, %v96
    %v105 = vpack.c.bf16 %v97, %v97
    %v106 = vpack.c.bf16 %v98, %v98
    %v107 = vpack.c.bf16 %v99, %v99
    %v108 = vld [vmem:[#allocation10] sm:$0xf]
    %v109 = vld [vmem:[#allocation10 + $0x4] sm:$0xf]
    %v110 = vld [vmem:[#allocation10 + $0x8] sm:$0xf]
    %v111 = vld [vmem:[#allocation10 + $0xc] sm:$0xf]
    %v120 = vunpack.c.l.b16 %v100
    %v121 = vunpack.c.l.b16 %v101
    %v122 = vunpack.c.l.b16 %v102
    %v123 = vunpack.c.l.b16 %v103
    %v124 = vunpack.c.l.b16 %v104
    %v125 = vunpack.c.l.b16 %v105
    %v126 = vunpack.c.l.b16 %v106
    %v127 = vunpack.c.l.b16 %v107
    %v128 = vpack.c.b16 %v121, %v120
    %v129 = vpack.c.b16 %v123, %v122
    %v130 = vpack.c.b16 %v125, %v124
    %v131 = vpack.c.b16 %v127, %v126
    %v136 = vunpack.c.l.b16 %v108
    %v137 = vunpack.c.l.b16 %v109
    %v138 = vunpack.c.l.b16 %v110
    %v139 = vunpack.c.l.b16 %v111
    %v140 = vpack.c.b16 %v137, %v136
    %v141 = vpack.c.b16 %v139, %v138
    %vm144 = vcmask 261120
    %v146 = vsel %vm144, %v128, 0
    %v149 = vsel %vm144, %v129, 0
    %v152 = vsel %vm144, %v130, 0
    %v155 = vsel %vm144, %v131, 0
    %157 = vmatpush.bf16.msra.mxu0 0
    %158 = vmatpush.bf16.msra.mxu0 0
    %159 = vmatpush.bf16.msra.mxu0 0
    %160 = vmatpush.bf16.msra.mxu0 0
    %161 = vmatpush.bf16.msra.mxu0 0
    %162 = vmatpush.bf16.msra.mxu0 0
    %163 = vmatpush.bf16.msra.mxu0 %v141
    %164 = vmatpush.bf16.msra.mxu0 %v140
    %165 = vmatmul.bf16.gmra.mxu0 %v146
    %v166 = vpop.f32.mrf.mxu0
    %v167 = vadd.f32 0.0, %v166
    %v168 = vpop.f32.mrf.mxu0
    %v169 = vadd.f32 0.0, %v168
    %170 = vmatmul.bf16.gmra.mxu0 %v149
    %v171 = vpop.f32.mrf.mxu0
    %v172 = vadd.f32 0.0, %v171
    %v173 = vpop.f32.mrf.mxu0
    %v174 = vadd.f32 0.0, %v173
    %175 = vmatmul.bf16.gmra.mxu0 %v152
    %v176 = vpop.f32.mrf.mxu0
    %v177 = vadd.f32 0.0, %v176
    %v178 = vpop.f32.mrf.mxu0
    %v179 = vadd.f32 0.0, %v178
    %180 = vmatmul.bf16.gmra.mxu0 %v155
    %v181 = vpop.f32.mrf.mxu0
    %v182 = vadd.f32 0.0, %v181
    %v183 = vpop.f32.mrf.mxu0
    %v184 = vadd.f32 0.0, %v183
    %185 = vdwg.mxu0
    %v186 = vld [vmem:[#allocation5] sm:$0xff]
    %v187 = vpack.c.bf16 %v186, %v186
    %v188 = vld [vmem:[#allocation11] sm:$0xf]
    %v189 = vld [vmem:[#allocation11 + $0x4] sm:$0xf]
    %v192 = vunpack.c.l.b16 %v188
    %v193 = vunpack.c.l.b16 %v189
    %v194 = vpack.c.b16 %v193, %v192
    %vm196 = vcmask 130048
    %v198 = vsel %vm196, %v187, 0
    %200 = vmatpush.bf16.msra.mxu0 0
    %201 = vmatpush.bf16.msra.mxu0 0
    %202 = vmatpush.bf16.msra.mxu0 0
    %203 = vmatpush.bf16.msra.mxu0 0
    %204 = vmatpush.bf16.msra.mxu0 0
    %205 = vmatpush.bf16.msra.mxu0 0
    %206 = vmatpush.bf16.msra.mxu0 0
    %207 = vmatpush.bf16.msra.mxu0 %v194
    %208 = vmatmul.bf16.gmra.mxu0 %v198
    %v209 = vpop.f32.mrf.mxu0
    %v210 = vadd.f32 0.0, %v209
    %v211 = vpop.f32.mrf.mxu0
    %212 = vdwg.mxu0
    %v214 = vrot.slane %v210, 1
    %v215 = vrot.slane %v210, 2
    %v216 = vrot.slane %v210, 3
    %v217 = vrot.slane %v210, 4
    %v218 = vrot.slane %v210, 5
    %v219 = vrot.slane %v210, 6
    %v220 = vrot.slane %v210, 7
    %v221 = vperm.slane %v210, 0
    %v222 = vperm.slane %v214, 0
    %v223 = vperm.slane %v215, 0
    %v224 = vperm.slane %v216, 0
    %v225 = vperm.slane %v217, 0
    %v226 = vperm.slane %v218, 0
    %v227 = vperm.slane %v219, 0
    %v228 = vperm.slane %v220, 0
    %v237 = vadd.f32 %v167, %v221
    %v238 = vadd.f32 %v169, %v222
    %v239 = vadd.f32 %v172, %v223
    %v240 = vadd.f32 %v174, %v224
    %v241 = vadd.f32 %v177, %v225
    %v242 = vadd.f32 %v179, %v226
    %v243 = vadd.f32 %v182, %v227
    %v244 = vadd.f32 %v184, %v228
    %v245 = vtanh.pop %v237
    %v246 = vtanh.pop %v238
    %v247 = vtanh.pop %v239
    %v248 = vtanh.pop %v240
    %v249 = vtanh.pop %v241
    %v250 = vtanh.pop %v242
    %v251 = vtanh.pop %v243
    %v252 = vtanh.pop %v244
    %v253 = vld [vmem:[%s4] sm:$0x1]
    %v255 = vperm.slane %v253, 0
    %v257 = vmul.f32 %v245, %v255
    %v258 = vmul.f32 %v246, %v255
    %v259 = vmul.f32 %v247, %v255
    %v260 = vmul.f32 %v248, %v255
    %v261 = vmul.f32 %v249, %v255
    %v262 = vmul.f32 %v250, %v255
    %v263 = vmul.f32 %v251, %v255
    %v264 = vmul.f32 %v252, %v255
    %v265 = vsel %vm144, %v257, 0.0
    %266 = vadd.xlane.f32.xlu0 %v265
    %v267 = vpop.xlane.xlu0 %266
    %v268 = vsel %vm144, %v258, 0.0
    %269 = vadd.xlane.f32.xlu0 %v268
    %v270 = vpop.xlane.xlu0 %269
    %v271 = vsel %vm144, %v259, 0.0
    %272 = vadd.xlane.f32.xlu0 %v271
    %v273 = vpop.xlane.xlu0 %272
    %v274 = vsel %vm144, %v260, 0.0
    %275 = vadd.xlane.f32.xlu0 %v274
    %v276 = vpop.xlane.xlu0 %275
    %v277 = vsel %vm144, %v261, 0.0
    %278 = vadd.xlane.f32.xlu0 %v277
    %v279 = vpop.xlane.xlu0 %278
    %v280 = vsel %vm144, %v262, 0.0
    %281 = vadd.xlane.f32.xlu0 %v280
    %v282 = vpop.xlane.xlu0 %281
    %v283 = vsel %vm144, %v263, 0.0
    %284 = vadd.xlane.f32.xlu0 %v283
    %v285 = vpop.xlane.xlu0 %284
    %v286 = vsel %vm144, %v264, 0.0
    %287 = vadd.xlane.f32.xlu0 %v286
    %v288 = vpop.xlane.xlu0 %287
    %v289 = vld [vmem:[#allocation2] sm:$0xff]
    %v298 = vlaneseq
    %v299 = vand.u32 %v298, 127
    %v300 = vperm.slane %v267, %v299
    %v301 = vperm.slane %v270, %v299
    %v302 = vperm.slane %v273, %v299
    %v303 = vperm.slane %v276, %v299
    %v304 = vperm.slane %v279, %v299
    %v305 = vperm.slane %v282, %v299
    %v306 = vperm.slane %v285, %v299
    %v307 = vperm.slane %v288, %v299
    %vm308 = vcmask 1041409
    %v309 = vsel %vm308, %v301, %v300
    %vm310 = vcmask 1042434
    %v311 = vsel %vm310, %v302, %v309
    %vm312 = vcmask 1043459
    %v313 = vsel %vm312, %v303, %v311
    %vm314 = vcmask 1044484
    %v315 = vsel %vm314, %v304, %v313
    %vm316 = vcmask 1045509
    %v317 = vsel %vm316, %v305, %v315
    %vm318 = vcmask 1046534
    %v319 = vsel %vm318, %v306, %v317
    %vm320 = vcmask 1047559
    %v321 = vsel %vm320, %v307, %v319
    %vm323 = vcmask 64512
    %v324 = vsel %vm323, %v321, -inf
    %325 = vmax.xlane.f32.xlu0 %v324
    %v326 = vpop.xlane.xlu0 %325
    %v327 = vmax.f32 %v289, %v326
    %v328 = vsub.f32 %v289, %v327
    %v329 = vmul.f32 %v328, 1.442695
    %v330 = vpow.pop %v329
    %332 = vset.pattern.permute.xlu0 0
    %333 = vperm.xlu0 %332, %v327
    %v334 = vpop.permute.xlu0 %333
    %v335 = vperm.slane %v334, 0
    %v336 = vperm.slane %v334, 1
    %v337 = vperm.slane %v334, 2
    %v338 = vperm.slane %v334, 3
    %v339 = vperm.slane %v334, 4
    %v340 = vperm.slane %v334, 5
    %v341 = vperm.slane %v334, 6
    %v342 = vperm.slane %v334, 7
    %v351 = vsub.f32 %v267, %v335
    %v352 = vsub.f32 %v270, %v336
    %v353 = vsub.f32 %v273, %v337
    %v354 = vsub.f32 %v276, %v338
    %v355 = vsub.f32 %v279, %v339
    %v356 = vsub.f32 %v282, %v340
    %v357 = vsub.f32 %v285, %v341
    %v358 = vsub.f32 %v288, %v342
    %v359 = vmul.f32 %v351, 1.442695
    %v360 = vpow.pop %v359
    %v361 = vmul.f32 %v352, 1.442695
    %v362 = vpow.pop %v361
    %v363 = vmul.f32 %v353, 1.442695
    %v364 = vpow.pop %v363
    %v365 = vmul.f32 %v354, 1.442695
    %v366 = vpow.pop %v365
    %v367 = vmul.f32 %v355, 1.442695
    %v368 = vpow.pop %v367
    %v369 = vmul.f32 %v356, 1.442695
    %v370 = vpow.pop %v369
    %v371 = vmul.f32 %v357, 1.442695
    %v372 = vpow.pop %v371
    %v373 = vmul.f32 %v358, 1.442695
    %v374 = vpow.pop %v373
    %v375 = vld [vmem:[#allocation3] sm:$0xff]
    %v376 = vmul.f32 %v330, %v375
    %385 = vset.pattern.permute.xlu0 0
    %386 = vperm.xlu0 %385, %v360
    %v387 = vpop.permute.xlu0 %386
    %388 = vset.pattern.permute.xlu0 0
    %389 = vperm.xlu0 %388, %v362
    %v390 = vpop.permute.xlu0 %389
    %391 = vset.pattern.permute.xlu0 0
    %392 = vperm.xlu0 %391, %v364
    %v393 = vpop.permute.xlu0 %392
    %394 = vset.pattern.permute.xlu0 0
    %395 = vperm.xlu0 %394, %v366
    %v396 = vpop.permute.xlu0 %395
    %397 = vset.pattern.permute.xlu0 0
    %398 = vperm.xlu0 %397, %v368
    %v399 = vpop.permute.xlu0 %398
    %400 = vset.pattern.permute.xlu0 0
    %401 = vperm.xlu0 %400, %v370
    %v402 = vpop.permute.xlu0 %401
    %403 = vset.pattern.permute.xlu0 0
    %404 = vperm.xlu0 %403, %v372
    %v405 = vpop.permute.xlu0 %404
    %406 = vset.pattern.permute.xlu0 0
    %407 = vperm.xlu0 %406, %v374
    %v408 = vpop.permute.xlu0 %407
    %v409 = vperm.slane %v387, %v299
    %v410 = vperm.slane %v390, %v299
    %v411 = vperm.slane %v393, %v299
    %v412 = vperm.slane %v396, %v299
    %v413 = vperm.slane %v399, %v299
    %v414 = vperm.slane %v402, %v299
    %v415 = vperm.slane %v405, %v299
    %v416 = vperm.slane %v408, %v299
    %v417 = vsel %vm308, %v410, %v409
    %v418 = vsel %vm310, %v411, %v417
    %v419 = vsel %vm312, %v412, %v418
    %v420 = vsel %vm314, %v413, %v419
    %v421 = vsel %vm316, %v414, %v420
    %v422 = vsel %vm318, %v415, %v421
    %v423 = vsel %vm320, %v416, %v422
    %v425 = vsel %vm323, %v423, 0.0
    %426 = vadd.xlane.f32.xlu0 %v425
    %v427 = vpop.xlane.xlu0 %426
    %v428 = vadd.f32 %v376, %v427
    %vm429 = vcmask 7168
    %430 = vst.msk [vmem:[#allocation3] sm:$0xff] %vm429, %v428
    %v431 = vld [vmem:[#allocation4] sm:$0xff]
    %433 = vset.pattern.permute.xlu0 0
    %434 = vperm.xlu0 %433, %v330
    %v435 = vpop.permute.xlu0 %434
    %v437 = vmul.f32 %v435, %v431
    %v446 = vmul.f32 %v387, %v92
    %v447 = vmul.f32 %v390, %v93
    %v448 = vmul.f32 %v393, %v94
    %v449 = vmul.f32 %v396, %v95
    %v450 = vmul.f32 %v399, %v96
    %v451 = vmul.f32 %v402, %v97
    %v452 = vmul.f32 %v405, %v98
    %v453 = vmul.f32 %v408, %v99
    %v454 = vsel %vm144, %v446, 0.0
    %v455 = vrot.slane %v454, 4
    %v456 = vadd.f32 %v454, %v455
    %v457 = vrot.slane %v456, 2
    %v458 = vadd.f32 %v456, %v457
    %v459 = vrot.slane %v458, 1
    %v460 = vadd.f32 %v458, %v459
    %v461 = vsel %vm144, %v447, 0.0
    %v462 = vrot.slane %v461, 4
    %v463 = vadd.f32 %v461, %v462
    %v464 = vrot.slane %v463, 2
    %v465 = vadd.f32 %v463, %v464
    %v466 = vrot.slane %v465, 1
    %v467 = vadd.f32 %v465, %v466
    %v468 = vsel %vm144, %v448, 0.0
    %v469 = vrot.slane %v468, 4
    %v470 = vadd.f32 %v468, %v469
    %v471 = vrot.slane %v470, 2
    %v472 = vadd.f32 %v470, %v471
    %v473 = vrot.slane %v472, 1
    %v474 = vadd.f32 %v472, %v473
    %v475 = vsel %vm144, %v449, 0.0
    %v476 = vrot.slane %v475, 4
    %v477 = vadd.f32 %v475, %v476
    %v478 = vrot.slane %v477, 2
    %v479 = vadd.f32 %v477, %v478
    %v480 = vrot.slane %v479, 1
    %v481 = vadd.f32 %v479, %v480
    %v482 = vsel %vm144, %v450, 0.0
    %v483 = vrot.slane %v482, 4
    %v484 = vadd.f32 %v482, %v483
    %v485 = vrot.slane %v484, 2
    %v486 = vadd.f32 %v484, %v485
    %v487 = vrot.slane %v486, 1
    %v488 = vadd.f32 %v486, %v487
    %v489 = vsel %vm144, %v451, 0.0
    %v490 = vrot.slane %v489, 4
    %v491 = vadd.f32 %v489, %v490
    %v492 = vrot.slane %v491, 2
    %v493 = vadd.f32 %v491, %v492
    %v494 = vrot.slane %v493, 1
    %v495 = vadd.f32 %v493, %v494
    %v496 = vsel %vm144, %v452, 0.0
    %v497 = vrot.slane %v496, 4
    %v498 = vadd.f32 %v496, %v497
    %v499 = vrot.slane %v498, 2
    %v500 = vadd.f32 %v498, %v499
    %v501 = vrot.slane %v500, 1
    %v502 = vadd.f32 %v500, %v501
    %v503 = vsel %vm144, %v453, 0.0
    %v504 = vrot.slane %v503, 4
    %v505 = vadd.f32 %v503, %v504
    %v506 = vrot.slane %v505, 2
    %v507 = vadd.f32 %v505, %v506
    %v508 = vrot.slane %v507, 1
    %v509 = vadd.f32 %v507, %v508
    %v518 = vsel %vm308, %v467, %v460
    %v519 = vsel %vm310, %v474, %v518
    %v520 = vsel %vm312, %v481, %v519
    %v521 = vsel %vm314, %v488, %v520
    %v522 = vsel %vm316, %v495, %v521
    %v523 = vsel %vm318, %v502, %v522
    %v524 = vsel %vm320, %v509, %v523
    %v526 = vadd.f32 %v437, %v524
    %527 = vst.msk [vmem:[#allocation4] sm:$0xff] %vm144, %v526
    %528 = vst.msk [vmem:[#allocation2] sm:$0xff] %vm429, %v327
    // Predicated region
    $region42: #{tpu_custom_call.1} parent=1 // pred_check
      %p529 = pneg %p83
    $region43: #{tpu_custom_call.1} parent=1 // pred_check_branch
      %531 = sbr.rel (%p529) target = $region45
    $region44: #{tpu_custom_call.1} parent=1 // pred_region
      %v532 = vld [vmem:[#allocation3] sm:$0xff]
      %v533 = vrcp.pop %v532
      %v534 = vld [vmem:[#allocation4] sm:$0xff]
      %536 = vset.pattern.permute.xlu0 0
      %537 = vperm.xlu0 %536, %v533
      %v538 = vpop.permute.xlu0 %537
      %v540 = vmul.f32 %v534, %v538
      %541 = vst.msk [vmem:[#allocation13] sm:$0xff] %vm144, %v540
    $region45: #{tpu_custom_call.1} parent=1 // pred_fallthru
      _
    // Predicated region
    $region46: #{tpu_custom_call.1} parent=1 // pred_check
      _
    $region47: #{tpu_custom_call.1} parent=1 // pred_check_branch
      %543 = sbr.rel (0) target = $region49
    $region48: #{tpu_custom_call.1} parent=1 // pred_region
      %545 = vsyncadd [#allocation7], 0
      %s547 = sshll.u32 [#allocation13], 4
      %s548 = int_to_ptr.vmem [resolvable:$true] %s547
      %s549 = sshll.u32 %s5, 4
      %s550 = int_to_ptr.hbm [resolvable:$true] %s549
      %552 = dma.vmem_to_hbm [thread:$0]  %s548, 128, %s550, [#allocation7]
    $region49: #{tpu_custom_call.1} parent=1 // pred_fallthru
      _
    // Predicated region
    $region50: #{tpu_custom_call.1} parent=1 // pred_check
      _
    $region51: #{tpu_custom_call.1} parent=1 // pred_check_branch
      %554 = sbr.rel (0) target = $region53
    $region52: #{tpu_custom_call.1} parent=1 // pred_region
      %556 = dma.done [#allocation7], 128
    $region53: #{tpu_custom_call.1} parent=1 // pred_fallthru
      _
    %557 = vsyncpa [#allocation6], 1
    %558 = vsyncpa [#allocation9], 1
    %559 = vsyncpa [#allocation12], 1
    %560 = vsyncpa [#allocation7], 1

</llo_original>
